<compile_context>
chip_gen: v7x
topology: tpu7x:2x2x1
jax: 0.10.0
libtpu: 0.0.40
codegen_flags: <defaults>
</compile_context>

<pallas_src>
import functools

import jax
import jax.numpy as jnp
from jax import lax
from jax.experimental import pallas as pl
from jax.experimental.pallas import tpu as pltpu


# ---------------------------------------------------------------------------
# Kernel
# ---------------------------------------------------------------------------
def _segblock_kernel(seg_ref, x_ref, wf_ref, sh_ref, out_ref, *, th, w):
    """One (batch n, row-tile t) step.

    seg_ref : (1, 1, 12, (th+2)*w)  column-pre-shifted, row-haloed seg tile
              channel = dj*4 + ci, flat spatial = local_row * w + col
    x_ref   : (1, C, th*w)          image features (channels-first, spatial flattened)
    wf_ref  : (2C, 36)              [conv1*bn_scale1 ; conv2*bn_scale2], col = di*12 + dj*4 + ci
    sh_ref  : (2C, 1)               [bn_shift1 ; bn_shift2]
    out_ref : (1, C, th*w)
    """
    p = th * w
    seg = seg_ref[0, 0]                                            # (12, (th+2)*w)

    # In-VMEM im2col: tap row di selects local rows [di, di+th) of the haloed tile, which is a
    # static lane slice [di*w, di*w + p) of the flattened tile.  Column shifts (dj) were folded
    # into the 12 channels by the wrapper, so 3 slices give all 36 taps.
    patch = jnp.concatenate([seg[:, di * w: di * w + p] for di in range(3)], axis=0)  # (36, p)

    # Single MXU matmul for both convs (+ fused BN scale), then add the fused BN shifts.
    c = jnp.dot(wf_ref[...], patch, preferred_element_type=jnp.float32)               # (2C, p)
    c = c + sh_ref[...]                                                               # (2C, 1) bcast

    cn = x_ref.shape[1]
    x = x_ref[0]                                                                      # (C, p)
    out_ref[0] = (x * c[:cn] + c[cn:]).astype(out_ref.dtype)


# ---------------------------------------------------------------------------
# Helpers
# ---------------------------------------------------------------------------
def _bilinear_matrix(out_size, in_size, dtype=jnp.float32):
    """Interpolation matrix (out_size, in_size) for bilinear upsampling, align_corners=True."""
    if out_size == 1:
        idx = jnp.zeros((1,), jnp.float32)
    else:
        idx = jnp.arange(out_size, dtype=jnp.float32) * (in_size - 1) / (out_size - 1)
    lo = jnp.clip(jnp.floor(idx).astype(jnp.int32), 0, in_size - 1)
    hi = jnp.clip(lo + 1, 0, in_size - 1)
    frac = idx - lo.astype(jnp.float32)
    rows = jnp.arange(out_size)
    m = jnp.zeros((out_size, in_size), dtype)
    m = m.at[rows, lo].add((1.0 - frac).astype(dtype))
    m = m.at[rows, hi].add(frac.astype(dtype))
    return m


def _pick_tile_rows(H, W, C, vmem_budget_bytes=20 << 20):
    """Largest row-tile TH that (a) divides H, (b) keeps the tile's flattened spatial size a
    multiple of 128 (or covers all of H), and (c) keeps the double-buffered per-step VMEM
    footprint (x tile + out tile + 12-chan haloed seg tile, f32) under `vmem_budget_bytes`.
    The ~20 MiB budget is sized for v7x (64 MiB VMEM / 32 MiB scoped default); v5e/v6e have
    more headroom."""
    per_row = (2 * C + 12) * W * 4 * 2        # x + out + seg bytes per tile row, double-buffered
    max_rows = max(1, vmem_budget_bytes // per_row)
    best = None
    for th in range(1, H + 1):
        if H % th:
            continue
        if (th * W) % 128 != 0 and th != H:
            continue                           # keep the lane dim of x/out blocks 128-aligned
        if th <= max_rows and (best is None or th > best):
            best = th
    if best is None:
        best = next((th for th in range(1, H + 1)
                     if H % th == 0 and (th * W) % 128 == 0), H)
    return best


# ---------------------------------------------------------------------------
# Forward pass (wrapper)
# ---------------------------------------------------------------------------
def seg_block_forward(x_nchw, segmaps_nchw, params):
    N, C, H, W = x_nchw.shape
    HW = H * W

    # --- bilinear upsample (align_corners=True, as in the PyTorch module) as two tiny matmuls
    Wh = _bilinear_matrix(H, segmaps_nchw.shape[2])
    Ww = _bilinear_matrix(W, segmaps_nchw.shape[3])
    seg_up = jnp.einsum('hH,wW,ncHW->nchw', Wh, Ww, segmaps_nchw)            # (N, 4, H, W)

    # --- 12-channel column-pre-shifted segmap: channel dj*4+ci holds seg[ci, h, w+dj-1] (zero pad)
    pad_w = jnp.pad(seg_up, ((0, 0), (0, 0), (0, 0), (1, 1)))                # (N, 4, H, W+2)
    seg12 = jnp.stack([pad_w[..., dj:dj + W] for dj in range(3)], axis=1)    # (N, 3, 4, H, W)
    seg12 = seg12.reshape(N, 12, H, W)
    seg12 = jnp.pad(seg12, ((0, 0), (0, 0), (1, 1), (0, 0)))                 # (N, 12, H+2, W) rows padded

    # --- overlapping (haloed) row tiles, flattened per tile: (N, nT, 12, (TH+2)*W)
    TH = _pick_tile_rows(H, W, C)
    nT = H // TH
    seg_tiles = jnp.stack(
        [seg12[:, :, t * TH: t * TH + TH + 2, :] for t in range(nT)], axis=1)
    seg_tiles = seg_tiles.reshape(N, nT, 12, (TH + 2) * W)

    # --- x / out stay channels-first with the (lane-dense) spatial axis last; pure reshapes
    x_flat = x_nchw.reshape(N, C, HW)

    # --- fold BN (eval) scale into the conv weights; stack conv1/conv2 into one (2C, 36) matrix
    def fold(w_oihw, g, b, m, v, eps=1e-5):
        scale = g / jnp.sqrt(v + eps)
        shift = b - m * scale
        wf = jnp.transpose(w_oihw, (0, 2, 3, 1)).reshape(C, 36)   # (co, di, dj, ci) -> (C, 36)
        return wf * scale[:, None], shift

    wf1, sh1 = fold(params['w1'], params['g1'], params['b1'], params['m1'], params['v1'])
    wf2, sh2 = fold(params['w2'], params['g2'], params['b2'], params['m2'], params['v2'])
    wf = jnp.concatenate([wf1, wf2], axis=0)                      # (2C, 36)
    sh = jnp.concatenate([sh1, sh2], axis=0)[:, None]             # (2C, 1)

    P = TH * W

    # --- VMEM budget / cost hints
    seg_tile_b = 12 * (TH + 2) * W * 4
    xio_tile_b = 2 * C * P * 4
    const_b = (2 * C * 36 + 2 * C) * 4
    est_vmem = 2 * (seg_tile_b + xio_tile_b + const_b)            # double-buffered estimate
    vmem_limit = int(min(64 << 20, max(32 << 20, 4 * est_vmem)))

    cost = pl.CostEstimate(
        flops=int(2 * N * HW * 36 * (2 * C) + 2 * N * C * HW),
        transcendentals=0,
        bytes_accessed=int(4 * (2 * x_flat.size + seg_tiles.size + wf.size + sh.size)))

    kernel = functools.partial(_segblock_kernel, th=TH, w=W)

    out_flat = pl.pallas_call(
        kernel,
        out_shape=jax.ShapeDtypeStruct((N, C, HW), x_nchw.dtype),
        grid_spec=pltpu.PrefetchScalarGridSpec(
            num_scalar_prefetch=0,
            grid=(N, nT),
            in_specs=[
                pl.BlockSpec((1, 1, 12, (TH + 2) * W), lambda n, t: (n, t, 0, 0)),  # seg tile
                pl.BlockSpec((1, C, P), lambda n, t: (n, 0, t)),                    # x tile
                pl.BlockSpec((2 * C, 36), lambda n, t: (0, 0)),                     # fused weights
                pl.BlockSpec((2 * C, 1), lambda n, t: (0, 0)),                      # fused shifts
            ],
            out_specs=pl.BlockSpec((1, C, P), lambda n, t: (n, 0, t)),
        ),
        compiler_params=pltpu.CompilerParams(
            dimension_semantics=("parallel", "parallel"),
            vmem_limit_bytes=vmem_limit),
        cost_estimate=cost,
    )(seg_tiles, x_flat, wf, sh)

    return out_flat.reshape(N, C, H, W)


# ---------------------------------------------------------------------------
# Plain-JAX reference (same math as the PyTorch module, eval-mode BN)
# ---------------------------------------------------------------------------
def seg_block_reference(x_nchw, segmaps_nchw, params):
    N, C, H, W = x_nchw.shape
    Wh = _bilinear_matrix(H, segmaps_nchw.shape[2])
    Ww = _bilinear_matrix(W, segmaps_nchw.shape[3])
    seg_up = jnp.einsum('hH,wW,ncHW->nchw', Wh, Ww, segmaps_nchw)

    def conv_bn(w, g, b, m, v, eps=1e-5):
        y = lax.conv_general_dilated(seg_up, w, (1, 1), ((1, 1), (1, 1)),
                                     dimension_numbers=('NCHW', 'OIHW', 'NCHW'))
        scale = (g / jnp.sqrt(v + eps)).reshape(1, C, 1, 1)
        shift = (b - m * g / jnp.sqrt(v + eps)).reshape(1, C, 1, 1)
        return y * scale + shift

    c1 = conv_bn(params['w1'], params['g1'], params['b1'], params['m1'], params['v1'])
    c2 = conv_bn(params['w2'], params['g2'], params['b2'], params['m2'], params['v2'])
    return x_nchw * c1 + c2


# ---------------------------------------------------------------------------
# Demo / self-check
# ---------------------------------------------------------------------------
if __name__ == "__main__":
    key = jax.random.PRNGKey(0)
    N, C, H, W = 2, 8, 16, 16      # channel_num = 8
    Hs, Ws = 8, 8                  # segmap spatial (upsampled to H, W)
    ks = jax.random.split(key, 12)

    x = jax.random.normal(ks[0], (N, C, H, W), jnp.float32)
    segmaps = jax.random.normal(ks[1], (N, 4, Hs, Ws), jnp.float32)

    params = {
        'w1': 0.1 * jax.random.normal(ks[2], (C, 4, 3, 3), jnp.float32),
        'w2': 0.1 * jax.random.normal(ks[3], (C, 4, 3, 3), jnp.float32),
        'g1': 1.0 + 0.1 * jax.random.normal(ks[4], (C,), jnp.float32),
        'b1': 0.1 * jax.random.normal(ks[5], (C,), jnp.float32),
        'm1': 0.1 * jax.random.normal(ks[6], (C,), jnp.float32),
        'v1': jnp.abs(1.0 + 0.1 * jax.random.normal(ks[7], (C,), jnp.float32)),
        'g2': 1.0 + 0.1 * jax.random.normal(ks[8], (C,), jnp.float32),
        'b2': 0.1 * jax.random.normal(ks[9], (C,), jnp.float32),
        'm2': 0.1 * jax.random.normal(ks[10], (C,), jnp.float32),
        'v2': jnp.abs(1.0 + 0.1 * jax.random.normal(ks[11], (C,), jnp.float32)),
    }

    out = jax.block_until_ready(seg_block_forward(x, segmaps, params))
    ref = jax.block_until_ready(seg_block_reference(x, segmaps, params))

    assert out.shape == (N, C, H, W)
    err = float(jnp.max(jnp.abs(out - ref)))
    assert jnp.allclose(out, ref, rtol=1e-3, atol=1e-3), err
    print("KERNEL_OK")
</pallas_src>

<mosaic_0001>
module attributes {stable_mosaic.version = 11 : i64} {
  func.func @_segblock_kernel(%arg0: i32, %arg1: i32, %arg2: memref<1x1x12x288xf32, #tpu.memory_space<vmem>>, %arg3: memref<1x8x256xf32, #tpu.memory_space<vmem>>, %arg4: memref<16x36xf32, #tpu.memory_space<vmem>>, %arg5: memref<16x1xf32, #tpu.memory_space<vmem>>, %arg6: memref<1x8x256xf32, #tpu.memory_space<vmem>>) attributes {dimension_semantics = [#tpu.dimension_semantics<parallel>, #tpu.dimension_semantics<parallel>], iteration_bounds = array<i64: 2, 1>, scalar_prefetch = 0 : i64, scratch_operands = 0 : i64, tpu.core_type = #tpu.core_type<tc>, window_params = [{transform_indices = @transform_0, window_bounds = array<i64: 1, 1, 12, 288>}, {transform_indices = @transform_1, window_bounds = array<i64: 1, 8, 256>}, {pipeline_mode = #tpu.pipeline_mode<synchronous>, transform_indices = @transform_2, window_bounds = array<i64: 16, 36>}, {pipeline_mode = #tpu.pipeline_mode<synchronous>, transform_indices = @transform_3, window_bounds = array<i64: 16, 1>}, {transform_indices = @transform_4, window_bounds = array<i64: 1, 8, 256>}]} {
    %c0 = arith.constant 0 : index
    %c0_0 = arith.constant 0 : index
    %c0_1 = arith.constant 0 : index
    %c0_2 = arith.constant 0 : index
    %0 = vector.load %arg2[%c0, %c0_0, %c0_1, %c0_2] : memref<1x1x12x288xf32, #tpu.memory_space<vmem>>, vector<1x1x12x288xf32>
    %1 = vector.shape_cast %0 : vector<1x1x12x288xf32> to vector<12x288xf32>
    %2 = vector.extract_strided_slice %1 {offsets = [0, 0], sizes = [12, 256], strides = [1, 1]} : vector<12x288xf32> to vector<12x256xf32>
    %3 = vector.extract_strided_slice %1 {offsets = [0, 16], sizes = [12, 256], strides = [1, 1]} : vector<12x288xf32> to vector<12x256xf32>
    %4 = vector.extract_strided_slice %1 {offsets = [0, 32], sizes = [12, 256], strides = [1, 1]} : vector<12x288xf32> to vector<12x256xf32>
    %5 = tpu.concatenate %2, %3, %4 in 0 : vector<12x256xf32>, vector<12x256xf32>, vector<12x256xf32> -> vector<36x256xf32>
    %c0_3 = arith.constant 0 : index
    %c0_4 = arith.constant 0 : index
    %6 = vector.load %arg4[%c0_3, %c0_4] : memref<16x36xf32, #tpu.memory_space<vmem>>, vector<16x36xf32>
    %cst = arith.constant dense<0.000000e+00> : vector<16x256xf32>
    %7 = tpu.matmul %6, %5, %cst {dimension_numbers = #tpu.dot_dimension_numbers<[1], [0], [0], [1], [0, 0, 1, 1], [], []>} : vector<16x36xf32>, vector<36x256xf32>, vector<16x256xf32> -> vector<16x256xf32>
    %c0_5 = arith.constant 0 : index
    %c0_6 = arith.constant 0 : index
    %8 = vector.load %arg5[%c0_5, %c0_6] : memref<16x1xf32, #tpu.memory_space<vmem>>, vector<16x1xf32>
    %9 = vector.broadcast %8 : vector<16x1xf32> to vector<16x256xf32>
    %10 = arith.addf %7, %9 : vector<16x256xf32>
    %c0_7 = arith.constant 0 : index
    %c0_8 = arith.constant 0 : index
    %c0_9 = arith.constant 0 : index
    %11 = vector.load %arg3[%c0_7, %c0_8, %c0_9] : memref<1x8x256xf32, #tpu.memory_space<vmem>>, vector<1x8x256xf32>
    %12 = vector.shape_cast %11 : vector<1x8x256xf32> to vector<8x256xf32>
    %13 = vector.extract_strided_slice %10 {offsets = [0, 0], sizes = [8, 256], strides = [1, 1]} : vector<16x256xf32> to vector<8x256xf32>
    %14 = arith.mulf %12, %13 : vector<8x256xf32>
    %15 = vector.extract_strided_slice %10 {offsets = [8, 0], sizes = [8, 256], strides = [1, 1]} : vector<16x256xf32> to vector<8x256xf32>
    %16 = arith.addf %14, %15 : vector<8x256xf32>
    %c0_10 = arith.constant 0 : index
    %c0_11 = arith.constant 0 : index
    %c0_12 = arith.constant 0 : index
    %17 = vector.load %arg6[%c0_10, %c0_11, %c0_12] : memref<1x8x256xf32, #tpu.memory_space<vmem>>, vector<1x8x256xf32>
    %18 = vector.shape_cast %17 : vector<1x8x256xf32> to vector<8x256xf32>
    %19 = vector.shape_cast %16 : vector<8x256xf32> to vector<1x8x256xf32>
    tpu.vector_store %arg6[%c0_10, %c0_11, %c0_12], %19 {strides = array<i32>} : memref<1x8x256xf32, #tpu.memory_space<vmem>>, vector<1x8x256xf32>,
    return
  }
  func.func @transform_0(%arg0: i32, %arg1: i32) -> (i32, i32, i32, i32) {
    %c0_i32 = arith.constant 0 : i32
    %c0_i32_0 = arith.constant 0 : i32
    %c0_i32_1 = arith.constant 0 : i32
    return %arg0, %arg1, %c0_i32, %c0_i32_0 : i32, i32, i32, i32
  }
  func.func @transform_1(%arg0: i32, %arg1: i32) -> (i32, i32, i32) {
    %c0_i32 = arith.constant 0 : i32
    %c0_i32_0 = arith.constant 0 : i32
    return %arg0, %c0_i32, %arg1 : i32, i32, i32
  }
  func.func @transform_2(%arg0: i32, %arg1: i32) -> (i32, i32) {
    %c0_i32 = arith.constant 0 : i32
    %c0_i32_0 = arith.constant 0 : i32
    %c0_i32_1 = arith.constant 0 : i32
    return %c0_i32, %c0_i32_0 : i32, i32
  }
  func.func @transform_3(%arg0: i32, %arg1: i32) -> (i32, i32) {
    %c0_i32 = arith.constant 0 : i32
    %c0_i32_0 = arith.constant 0 : i32
    %c0_i32_1 = arith.constant 0 : i32
    return %c0_i32, %c0_i32_0 : i32, i32
  }
  func.func @transform_4(%arg0: i32, %arg1: i32) -> (i32, i32, i32) {
    %c0_i32 = arith.constant 0 : i32
    %c0_i32_0 = arith.constant 0 : i32
    return %arg0, %c0_i32, %arg1 : i32, i32, i32
  }
}

</mosaic_0001>

<llo_original>
// kernel: tpu_custom_call.1
$region0: #{tpu_custom_call.1}
  #allocation0 [shape = 'u32[]', space=smem, size = 0x4, offset = 0x4, fixed_abs, tag = 'smem constant byte address 0x4 - core index']
  #allocation1 [shape = 'u32[144,128]{1,0:T(1,128)}', space=vmem, size = 0x12000, scoped, tag = 'internal scratch']
  %s0 = inlined_call_operand.vmem [shape: f32[2,1,12,288], index: 0, kind: input, shape index: {}]
  %s1 = inlined_call_operand.vmem [shape: f32[2,8,256], index: 1, kind: input, shape index: {}]
  %s2 = inlined_call_operand.vmem [shape: f32[16,36], index: 2, kind: input, shape index: {}]
  %s3 = inlined_call_operand.vmem [shape: f32[16,1], index: 3, kind: input, shape index: {}]
  %s4 = inlined_call_operand.hbm [shape: f32[2,8,256], index: 4, kind: output, shape index: {}]
  %s5 = sld [smem:[#allocation0]]
  $region49: #{tpu_custom_call.1} parent=0
    _
  %s7 = ssub.s32 1, %s5
  %s8 = scalar_select 0, %s7, %s5
  $region1: #{tpu_custom_call.1} parent=0
    #allocation2 [shape = 'u8[16384]{0}', space=vmem, size = 0x4000, scoped, tag = 'output window, operand 0']
    #allocation3 [shape = 's32[2]{0}', space=sflag, size = 0x8, scoped, tag = 'scoped memory for tpu_custom_call.1']
    %9 = vsyncpa [#allocation3], 0
    %s10 = scalar_lea.sflag [#allocation3], 1
    %11 = vsyncpa %s10, 0
    loop: start=0, step=1, limit=4
    $region2: #{tpu_custom_call.1} parent=1 // loop_pre_header
      _
    $region3: #{tpu_custom_call.1} parent=1 // loop_header
      %s13 = sphi 0, %s17
      %p14 = scmp.ge.s32.totalorder %s13, 4
      %s20 = sphi 0, %s32
      %s21 = sphi 0, %s28
      %s22 = sphi 0, %s20
      %s23 = sphi 0, %s21
      %s24 = sphi 0, %s22
      %s25 = sphi 0, %s23
      %s37 = sphi 0, %s39
      %s40 = sphi 0, %s37
      %s41 = sphi 0, %s40
      %s57 = sphi 0, %s41
      %s65 = sphi 0, %s67
      %s68 = sphi 0, %s65
      %s69 = sphi 0, %s68
      %s85 = sphi 0, %s69
      %s89 = sphi 0, %s89
      %s91 = sphi 0, %s89
      %s92 = sphi 0, %s91
      %s106 = sphi 0, %s92
      %s110 = sphi 0, %s110
      %s112 = sphi 0, %s110
      %s113 = sphi 0, %s112
      %s127 = sphi 0, %s113
      %s135 = sphi 0, %s137
      %s138 = sphi 0, %s135
      %s139 = sphi 0, %s138
      %s155 = sphi 0, %s139
    $region4: #{tpu_custom_call.1} parent=1 // loop_header_branch
      %16 = sbr.rel (%p14) target = $region8
    $region5: #{tpu_custom_call.1} parent=1 // loop_body
      %s18 = ssub.s32 %s13, 1
      %s19 = ssub.s32 %s13, 2
      %s26 = sadd.s32 1, %s21
      %p27 = scmp.ge.s32.totalorder %s26, 1
      %s28 = scalar_select %p27, 0, %s26
      %s29 = sadd.s32 1, %s20
      %s30 = scalar_select %p27, %s29, %s20
      %p31 = scmp.ge.s32.totalorder %s30, 2
      %s32 = scalar_select %p31, 0, %s30
      %s33 = ssub.s32 %s20, %s32
      %s34 = ssub.s32 %s21, %s28
      %s35 = sor.u32 %s33, %s34
      %p36 = scmp.eq.s32.totalorder %s35, 0
      %s38 = sadd.s32 %s37, 1
      %s39 = scalar_select %p36, %s37, %s38
      %p42 = pneg %p36
      %p43 = scmp.eq.s32.totalorder %s13, 1
      %p44 = por %p42, %p43
      %p45 = scmp.ne.s32.totalorder %s37, %s40
      %p46 = scmp.eq.s32.totalorder %s13, 0
      %p47 = por %p45, %p46
      %p48 = scmp.ne.s32.totalorder %s37, %s40
      %p49 = scmp.eq.s32.totalorder %s18, 1
      %p50 = por %p48, %p49
      %p51 = scmp.ne.s32.totalorder %s40, %s41
      %p52 = scmp.eq.s32.totalorder %s18, 0
      %p53 = por %p51, %p52
      %p54 = scmp.ne.s32.totalorder %s40, %s41
      %p55 = scmp.eq.s32.totalorder %s19, 1
      %p56 = por %p54, %p55
      %p58 = scmp.ne.s32.totalorder %s41, %s57
      %p59 = scmp.eq.s32.totalorder %s19, 0
      %p60 = por %p58, %p59
      %s61 = ssub.s32 %s20, %s32
      %s62 = ssub.s32 %s21, %s28
      %s63 = sor.u32 %s61, %s62
      %p64 = scmp.eq.s32.totalorder %s63, 0
      %s66 = sadd.s32 %s65, 1
      %s67 = scalar_select %p64, %s65, %s66
      %p70 = pneg %p64
      %p71 = scmp.eq.s32.totalorder %s13, 1
      %p72 = por %p70, %p71
      %p73 = scmp.ne.s32.totalorder %s65, %s68
      %p74 = scmp.eq.s32.totalorder %s13, 0
      %p75 = por %p73, %p74
      %p76 = scmp.ne.s32.totalorder %s65, %s68
      %p77 = scmp.eq.s32.totalorder %s18, 1
      %p78 = por %p76, %p77
      %p79 = scmp.ne.s32.totalorder %s68, %s69
      %p80 = scmp.eq.s32.totalorder %s18, 0
      %p81 = por %p79, %p80
      %p82 = scmp.ne.s32.totalorder %s68, %s69
      %p83 = scmp.eq.s32.totalorder %s19, 1
      %p84 = por %p82, %p83
      %p86 = scmp.ne.s32.totalorder %s69, %s85
      %p87 = scmp.eq.s32.totalorder %s19, 0
      %p88 = por %p86, %p87
      %s90 = sadd.s32 %s89, 1
      %p93 = scmp.eq.s32.totalorder %s13, 1
      %p94 = scmp.ne.s32.totalorder %s89, %s91
      %p95 = scmp.eq.s32.totalorder %s13, 0
      %p96 = por %p94, %p95
      %p97 = scmp.ne.s32.totalorder %s89, %s91
      %p98 = scmp.eq.s32.totalorder %s18, 1
      %p99 = por %p97, %p98
      %p100 = scmp.ne.s32.totalorder %s91, %s92
      %p101 = scmp.eq.s32.totalorder %s18, 0
      %p102 = por %p100, %p101
      %p103 = scmp.ne.s32.totalorder %s91, %s92
      %p104 = scmp.eq.s32.totalorder %s19, 1
      %p105 = por %p103, %p104
      %p107 = scmp.ne.s32.totalorder %s92, %s106
      %p108 = scmp.eq.s32.totalorder %s19, 0
      %p109 = por %p107, %p108
      %s111 = sadd.s32 %s110, 1
      %p114 = scmp.eq.s32.totalorder %s13, 1
      %p115 = scmp.ne.s32.totalorder %s110, %s112
      %p116 = scmp.eq.s32.totalorder %s13, 0
      %p117 = por %p115, %p116
      %p118 = scmp.ne.s32.totalorder %s110, %s112
      %p119 = scmp.eq.s32.totalorder %s18, 1
      %p120 = por %p118, %p119
      %p121 = scmp.ne.s32.totalorder %s112, %s113
      %p122 = scmp.eq.s32.totalorder %s18, 0
      %p123 = por %p121, %p122
      %p124 = scmp.ne.s32.totalorder %s112, %s113
      %p125 = scmp.eq.s32.totalorder %s19, 1
      %p126 = por %p124, %p125
      %p128 = scmp.ne.s32.totalorder %s113, %s127
      %p129 = scmp.eq.s32.totalorder %s19, 0
      %p130 = por %p128, %p129
      %s131 = ssub.s32 %s20, %s32
      %s132 = ssub.s32 %s21, %s28
      %s133 = sor.u32 %s131, %s132
      %p134 = scmp.eq.s32.totalorder %s133, 0
      %s136 = sadd.s32 %s135, 1
      %s137 = scalar_select %p134, %s135, %s136
      %p140 = pneg %p134
      %p141 = scmp.eq.s32.totalorder %s13, 1
      %p142 = por %p140, %p141
      %p143 = scmp.ne.s32.totalorder %s135, %s138
      %p144 = scmp.eq.s32.totalorder %s13, 0
      %p145 = por %p143, %p144
      %p146 = scmp.ne.s32.totalorder %s135, %s138
      %p147 = scmp.eq.s32.totalorder %s18, 1
      %p148 = por %p146, %p147
      %p149 = scmp.ne.s32.totalorder %s138, %s139
      %p150 = scmp.eq.s32.totalorder %s18, 0
      %p151 = por %p149, %p150
      %p152 = scmp.ne.s32.totalorder %s138, %s139
      %p153 = scmp.eq.s32.totalorder %s19, 1
      %p154 = por %p152, %p153
      %p156 = scmp.ne.s32.totalorder %s139, %s155
      %p157 = scmp.eq.s32.totalorder %s19, 0
      %p158 = por %p156, %p157
      %p159 = scmp.le.s32.totalorder 1, %s13
      %p160 = scmp.lt.s32.totalorder %s13, 3
      %p161 = pnand %p159, %p160
      %p162 = pneg %p161
      // Predicated region
      $region9: #{tpu_custom_call.1} parent=5 // pred_check
        _
      $region10: #{tpu_custom_call.1} parent=5 // pred_check_branch
        %164 = sbr.rel (%p161) target = $region12
      $region11: #{tpu_custom_call.1} parent=5 // pred_region
        %s165 = ssub.s32 %s13, 1
        // Predicated region
        $region13: #{tpu_custom_call.1} parent=11 // pred_check
          %p166 = pneg %p102
        $region14: #{tpu_custom_call.1} parent=11 // pred_check_branch
          %168 = sbr.rel (%p166) target = $region16
        $region15: #{tpu_custom_call.1} parent=11 // pred_region
          _
        $region16: #{tpu_custom_call.1} parent=11 // pred_fallthru
          _
        // Predicated region
        $region17: #{tpu_custom_call.1} parent=11 // pred_check
          %p169 = pneg %p123
        $region18: #{tpu_custom_call.1} parent=11 // pred_check_branch
          %171 = sbr.rel (%p169) target = $region20
        $region19: #{tpu_custom_call.1} parent=11 // pred_region
          _
        $region20: #{tpu_custom_call.1} parent=11 // pred_fallthru
          _
      $region12: #{tpu_custom_call.1} parent=5 // pred_fallthru
        _
      %p172 = scmp.lt.s32.totalorder %s13, 2
      // Predicated region
      $region21: #{tpu_custom_call.1} parent=5 // pred_check
        %p173 = pneg %p172
      $region22: #{tpu_custom_call.1} parent=5 // pred_check_branch
        %175 = sbr.rel (%p173) target = $region24
      $region23: #{tpu_custom_call.1} parent=5 // pred_region
        // Predicated region
        $region25: #{tpu_custom_call.1} parent=23 // pred_check
          %p176 = pneg %p47
        $region26: #{tpu_custom_call.1} parent=23 // pred_check_branch
          %178 = sbr.rel (%p176) target = $region28
        $region27: #{tpu_custom_call.1} parent=23 // pred_region
          %p179 = scmp.lt.s32.totalorder %s20, 1
          %s180 = scalar_select %p179, %s20, 1
          %p181 = scmp.lt.s32.totalorder %s21, 0
          %s182 = scalar_select %p181, %s21, 0
          %s183 = smul.addr %s182, 6
          %s184 = smul.addr %s180, 6
          %s185 = sadd.s32 %s183, %s184
          %s186 = smul.addr %s185, 8
          %s187 = scalar_lea.vmem %s0, %s186
        $region28: #{tpu_custom_call.1} parent=23 // pred_fallthru
          _
        // Predicated region
        $region29: #{tpu_custom_call.1} parent=23 // pred_check
          %p188 = pneg %p75
        $region30: #{tpu_custom_call.1} parent=23 // pred_check_branch
          %190 = sbr.rel (%p188) target = $region32
        $region31: #{tpu_custom_call.1} parent=23 // pred_region
          %s191 = smul.u32 2, %s21
          %p192 = scmp.lt.s32.totalorder %s20, 1
          %s193 = scalar_select %p192, %s20, 1
          %p194 = scmp.lt.s32.totalorder %s191, 1
          %s195 = scalar_select %p194, %s191, 1
          %s196 = smul.addr %s193, 2
          %s197 = sadd.s32 %s195, %s196
          %s198 = smul.addr %s197, 8
          %s199 = scalar_lea.vmem %s1, %s198
          %s200 = smul.u32 2, %s21
        $region32: #{tpu_custom_call.1} parent=23 // pred_fallthru
          _
      $region24: #{tpu_custom_call.1} parent=5 // pred_fallthru
        _
      %p201 = scmp.le.s32.totalorder 1, %s13
      %p202 = scmp.lt.s32.totalorder %s13, 3
      %p203 = pnand %p201, %p202
      %p204 = pneg %p203
      // Predicated region
      $region33: #{tpu_custom_call.1} parent=5 // pred_check
        _
      $region34: #{tpu_custom_call.1} parent=5 // pred_check_branch
        %206 = sbr.rel (%p203) target = $region36
      $region35: #{tpu_custom_call.1} parent=5 // pred_region
        %s207 = ssub.s32 %s13, 1
        %p208 = scmp.lt.s32.totalorder %s22, 1
        %s209 = scalar_select %p208, %s22, 1
        %p210 = scmp.lt.s32.totalorder %s23, 0
        %s211 = scalar_select %p210, %s23, 0
        %s212 = smul.addr %s211, 6
        %s213 = smul.addr %s209, 6
        %s214 = sadd.s32 %s212, %s213
        %s215 = smul.addr %s214, 8
        %s216 = scalar_lea.vmem %s0, %s215
        %p217 = pneg %p53
        %p218 = pneg %p50
        %s219 = smul.u32 2, %s23
        %p220 = scmp.lt.s32.totalorder %s22, 1
        %s221 = scalar_select %p220, %s22, 1
        %p222 = scmp.lt.s32.totalorder %s219, 1
        %s223 = scalar_select %p222, %s219, 1
        %s224 = smul.addr %s221, 2
        %s225 = sadd.s32 %s223, %s224
        %s226 = smul.addr %s225, 8
        %s227 = scalar_lea.vmem %s1, %s226
        %p228 = pneg %p81
        %p229 = pneg %p78
        %p230 = pneg %p102
        %p231 = pneg %p99
        %p232 = pneg %p123
        %p233 = pneg %p120
        %p234 = pneg %p151
        %p235 = pneg %p148
        %s236 = sand.u32 %s138, 1
        %s237 = scalar_lea.sflag [#allocation3], %s236
        %s238 = sand.u32 %s138, 1
        %s239 = smul.addr %s238, 16
        %s240 = scalar_lea.vmem [#allocation2], %s239
        %p241 = scmp.lt.s32.totalorder %s22, 1
        %s242 = scalar_select %p241, %s22, 1
        %p243 = scmp.lt.s32.totalorder %s23, 0
        %s244 = scalar_select %p243, %s23, 0
        %s245 = smul.addr %s244, 6
        %s246 = smul.addr %s242, 6
        %s247 = sadd.s32 %s245, %s246
        %s248 = smul.addr %s247, 8
        %s249 = scalar_lea.vmem %s0, %s248
        %s250 = smul.u32 2, %s23
        %p251 = scmp.lt.s32.totalorder %s22, 1
        %s252 = scalar_select %p251, %s22, 1
        %p253 = scmp.lt.s32.totalorder %s250, 1
        %s254 = scalar_select %p253, %s250, 1
        %s255 = smul.addr %s252, 2
        %s256 = sadd.s32 %s254, %s255
        %s257 = smul.addr %s256, 8
        %s258 = scalar_lea.vmem %s1, %s257
        %s259 = smul.u32 2, %s23
        %s260 = smul.u32 2, %s23
        %v261 = vld [vmem:[%s249] sm:$0xff]
        %v262 = vld [vmem:[%s249 + $0x8] sm:$0xff]
        %v263 = vld [vmem:[%s249 + $0x10] sm:$0xff]
        %v264 = vld [vmem:[%s249 + $0x18] sm:$0xf]
        %v265 = vld [vmem:[%s249 + $0x20] sm:$0xf]
        %v266 = vld [vmem:[%s249 + $0x28] sm:$0xf]
        %vm273 = vcmask 1043456
        %v274 = vrot.slane %v261, 4
        %v275 = vrot.slane %v262, 4
        %v276 = vrot.slane %v263, 4
        %v277 = vrot.slane %v264, 4
        %v278 = vsel %vm273, %v274, %v277
        %v279 = vrot.slane %v265, 4
        %v280 = vsel %vm273, %v275, %v279
        %v281 = vrot.slane %v266, 4
        %v282 = vsel %vm273, %v276, %v281
        %283 = vrot.lane.b32.xlu0 %v274, 112
        %v284 = vpop.permute.xlu0 %283
        %285 = vrot.lane.b32.xlu0 %v275, 112
        %v286 = vpop.permute.xlu0 %285
        %287 = vrot.lane.b32.xlu0 %v276, 112
        %v288 = vpop.permute.xlu0 %287
        %289 = vrot.lane.b32.xlu0 %v278, 112
        %v290 = vpop.permute.xlu0 %289
        %291 = vrot.lane.b32.xlu0 %v280, 112
        %v292 = vpop.permute.xlu0 %291
        %293 = vrot.lane.b32.xlu0 %v282, 112
        %v294 = vpop.permute.xlu0 %293
        %vm295 = vcmask 916480
        %v296 = vsel %vm295, %v284, %v286
        %v297 = vsel %vm295, %v286, %v288
        %v298 = vsel %vm295, %v290, %v292
        %v299 = vsel %vm295, %v292, %v294
        %304 = vrot.lane.b32.xlu0 %v261, 96
        %v305 = vpop.permute.xlu0 %304
        %306 = vrot.lane.b32.xlu0 %v262, 96
        %v307 = vpop.permute.xlu0 %306
        %308 = vrot.lane.b32.xlu0 %v263, 96
        %v309 = vpop.permute.xlu0 %308
        %310 = vrot.lane.b32.xlu0 %v264, 96
        %v311 = vpop.permute.xlu0 %310
        %312 = vrot.lane.b32.xlu0 %v265, 96
        %v313 = vpop.permute.xlu0 %312
        %314 = vrot.lane.b32.xlu0 %v266, 96
        %v315 = vpop.permute.xlu0 %314
        %vm316 = vcmask 785408
        %v317 = vsel %vm316, %v305, %v307
        %v318 = vsel %vm316, %v307, %v309
        %v319 = vsel %vm316, %v311, %v313
        %v320 = vsel %vm316, %v313, %v315
        %v323 = vsel %vm273, %v264, %v296
        %v324 = vsel %vm273, %v265, %v297
        %v325 = vld [vmem:[%s2] sm:$0xff]
        %v326 = vld [vmem:[%s2 + $0x8] sm:$0xff]
        %v327 = vld [vmem:[%s3] sm:$0xff]
        %v328 = vld [vmem:[%s3 + $0x8] sm:$0xff]
        %330 = vset.pattern.permute.xlu0 0
        %331 = vperm.xlu0 %330, %v327
        %v332 = vpop.permute.xlu0 %331
        %335 = vset.pattern.permute.xlu0 0
        %336 = vperm.xlu0 %335, %v328
        %v337 = vpop.permute.xlu0 %336
        %vm339 = vcmask 293888
        %v341 = vsel %vm339, %v325, 0
        %v344 = vsel %vm339, %v326, 0
        %v346 = vsel %vm273, %v319, 0
        %v348 = vsel %vm273, %v320, 0
        %350 = vmatprep.subr.mxu0 %v262
        %351 = vmatpush1.msra.mxu0 %v261
        %352 = vmatprep.subr.mxu0 %v324
        %353 = vmatpush1.msra.mxu0 %v323
        %354 = vmatprep.subr.mxu0 %v299
        %355 = vmatpush1.msra.mxu0 %v298
        %356 = vmatprep.subr.mxu0 %v318
        %357 = vmatpush1.msra.mxu0 %v317
        %358 = vmatprep.subr.mxu0 %v348
        %359 = vmatpush1.msra.mxu0 %v346
        %360 = vmatprep.subr.mxu0 0.0
        %361 = vmatpush1.msra.mxu0 0.0
        %362 = vmatprep.subr.mxu0 0.0
        %363 = vmatpush1.msra.mxu0 0.0
        %364 = vmatprep.subr.mxu0 0.0
        %365 = vmatpush1.msra.mxu0 0.0
        %366 = vmatprep.subr.mxu0 0.0
        %367 = vmatpush1.msra.mxu0 0.0
        %368 = vmatprep.subr.mxu0 0.0
        %369 = vmatpush1.msra.mxu0 0.0
        %370 = vmatprep.subr.mxu0 0.0
        %371 = vmatpush1.msra.mxu0 0.0
        %372 = vmatprep.subr.mxu0 0.0
        %373 = vmatpush1.msra.mxu0 0.0
        %374 = vmatprep.subr.mxu0 0.0
        %375 = vmatpush1.msra.mxu0 0.0
        %376 = vmatprep.subr.mxu0 0.0
        %377 = vmatpush1.msra.mxu0 0.0
        %378 = vmatprep.subr.mxu0 0.0
        %379 = vmatpush1.msra.mxu0 0.0
        %380 = vmatprep.subr.mxu0 0.0
        %381 = vmatpush1.msra.mxu0 0.0
        %382 = vmatprep.subr.mxu0 0.0
        %383 = vmatpush1.msra.mxu0 0.0
        %384 = vmatprep.subr.mxu0 0.0
        %385 = vmatpush1.msra.mxu0 0.0
        %386 = vmatprep.subr.mxu0 0.0
        %387 = vmatpush1.msra.mxu0 0.0
        %388 = vmatprep.subr.mxu0 0.0
        %389 = vmatpush1.msra.mxu0 0.0
        %390 = vmatprep.subr.mxu0 0.0
        %391 = vmatpush1.msra.mxu0 0.0
        %392 = vmatprep.subr.mxu0 0.0
        %393 = vmatpush1.msra.mxu0 0.0
        %394 = vmatprep.subr.mxu0 0.0
        %395 = vmatpush1.msra.mxu0 0.0
        %396 = vmatprep.subr.mxu0 0.0
        %397 = vmatpush1.msra.mxu0 0.0
        %398 = vmatprep.subr.mxu0 0.0
        %399 = vmatpush1.msra.mxu0 0.0
        %400 = vmatprep.subr.mxu0 0.0
        %401 = vmatpush1.msra.mxu0 0.0
        %402 = vmatprep.subr.mxu0 0.0
        %403 = vmatpush1.msra.mxu0 0.0
        %404 = vmatprep.subr.mxu0 0.0
        %405 = vmatpush1.msra.mxu0 0.0
        %406 = vmatprep.subr.mxu0 0.0
        %407 = vmatpush1.msra.mxu0 0.0
        %408 = vmatprep.subr.mxu0 0.0
        %409 = vmatpush1.msra.mxu0 0.0
        %410 = vmatprep.subr.mxu0 0.0
        %411 = vmatpush1.msra.mxu0 0.0
        %412 = vmatprep.subr.mxu0 0.0
        %413 = vmatpush1.msra.mxu0 0.0
        %414 = vmatprep.mubr.f32.mxu0 0.0
        %415 = vmatmul.mubr.f32.gmra.mrb[0].mxu0 %v341
        %v416 = vpop.f32.mrb[0].mxu0
        %v417 = vadd.f32 %v332, %v416
        %v418 = vpop.f32.mrb[0].mxu0
        %v419 = vadd.f32 %v332, %v418
        %420 = vmatprep.mubr.f32.mxu0 0.0
        %421 = vmatmul.mubr.f32.gmra.mrb[0].mxu0 %v344
        %v422 = vpop.f32.mrb[0].mxu0
        %v423 = vadd.f32 %v337, %v422
        %v424 = vpop.f32.mrb[0].mxu0
        %v425 = vadd.f32 %v337, %v424
        %426 = vdwg.mxu0
        %v427 = vld [vmem:[%s258] sm:$0xff]
        %v428 = vld [vmem:[%s258 + $0x8] sm:$0xff]
        %v429 = vmul.f32 %v427, %v417
        %v430 = vmul.f32 %v428, %v419
        %v431 = vadd.f32 %v429, %v423
        %v432 = vadd.f32 %v430, %v425
        %433 = vst [vmem:[%s240] sm:$0xff] %v431
        %434 = vst [vmem:[%s240 + $0x8] sm:$0xff] %v432
        %s435 = sand.u32 %s138, 1
        %s436 = scalar_lea.sflag [#allocation3], %s435
        %s437 = sand.u32 %s138, 1
        %s438 = smul.addr %s437, 16
        %s439 = scalar_lea.vmem [#allocation2], %s438
        // Predicated region
        $region37: #{tpu_custom_call.1} parent=35 // pred_check
          %p440 = pneg %p148
        $region38: #{tpu_custom_call.1} parent=35 // pred_check_branch
          %442 = sbr.rel (%p440) target = $region40
        $region39: #{tpu_custom_call.1} parent=35 // pred_region
          %s443 = smul.u32 2, %s23
          %s445 = ssub.s32 256, 256
          %446 = vsyncadd %s436, %s445
          %s447 = smul.addr %s22, 2
          %s448 = sadd.s32 %s443, %s447
          %s449 = smul.addr %s448, 128
          %s450 = scalar_lea.hbm %s4, %s449
          %s452 = sshll.u32 %s439, 4
          %s453 = int_to_ptr.vmem [resolvable:$true] %s452
          %455 = dma.vmem_to_hbm [thread:$0]  %s453, 256, %s450, %s436
        $region40: #{tpu_custom_call.1} parent=35 // pred_fallthru
          _
      $region36: #{tpu_custom_call.1} parent=5 // pred_fallthru
        _
      %p456 = scmp.le.s32.totalorder 2, %s13
      // Predicated region
      $region41: #{tpu_custom_call.1} parent=5 // pred_check
        %p457 = pneg %p456
      $region42: #{tpu_custom_call.1} parent=5 // pred_check_branch
        %459 = sbr.rel (%p457) target = $region44
      $region43: #{tpu_custom_call.1} parent=5 // pred_region
        %s460 = ssub.s32 %s13, 2
        // Predicated region
        $region45: #{tpu_custom_call.1} parent=43 // pred_check
          %p461 = pneg %p154
        $region46: #{tpu_custom_call.1} parent=43 // pred_check_branch
          %463 = sbr.rel (%p461) target = $region48
        $region47: #{tpu_custom_call.1} parent=43 // pred_region
          %s464 = sand.u32 %s139, 1
          %s465 = scalar_lea.sflag [#allocation3], %s464
          %s466 = sand.u32 %s139, 1
          %s467 = smul.addr %s466, 16
          %s468 = scalar_lea.vmem [#allocation2], %s467
          %469 = dma.done %s465, 256
        $region48: #{tpu_custom_call.1} parent=43 // pred_fallthru
          _
      $region44: #{tpu_custom_call.1} parent=5 // pred_fallthru
        _
    $region6: #{tpu_custom_call.1} parent=1 // loop_footer
      %s17 = sadd.s32 1, %s13
    $region7: #{tpu_custom_call.1} parent=1 // loop_footer_branch
      %12 = sbr.rel target = $region3
    $region8: #{tpu_custom_call.1} parent=1 // loop_exit
      _
    %470 = vsyncpa [#allocation3], 1
    %s471 = scalar_lea.sflag [#allocation3], 1
    %472 = vsyncpa %s471, 1

</llo_original>
